<compile_context>
chip_gen: v7x
topology: tpu7x:2x2x1
jax: 0.10.0
libtpu: 0.0.40
codegen_flags: <defaults>
</compile_context>

<pallas_src>
from functools import partial

import numpy as np
import jax
import jax.numpy as jnp
from jax import lax
from jax.experimental import pallas as pl
from jax.experimental.pallas import tpu as pltpu

# ----- module constants (mirroring mcorr.py defaults) -----
BANDWIDTH = 5.0            # overwritten in forward: float(max(T // 32, 1))
NMF_MAX_ITER = 200         # fixed iteration count inside the kernel
NMF_TOL = 1e-4             # TODO(synk): in-kernel early-stop on reconstruction tol not implemented (fixed iters)
DT_PVAL = 0.01
OMP_TOL = 0.1


# =====================================================================
# padding / tiling helpers
# =====================================================================
def _round_up(x, m):
    return ((x + m - 1) // m) * m


def _pad_and_tile(size, quantum, max_tile):
    """Return (padded_size, tile) with quantum | tile | padded_size and tile <= max_tile."""
    p = _round_up(size, quantum)
    if p <= max_tile:
        return p, p
    return _round_up(p, max_tile), max_tile


# =====================================================================
# Pallas kernel 1: activity-score transform (tiled matmul)
#   out[m, t] = sum_s |diff(apx)|[m, s] * K[s, t]
#   |diff| is precomputed in the wrapper so the LHS is lane-aligned.
# =====================================================================
def _activity_kernel(d_ref, k_ref, o_ref, acc_ref):
    kdim = pl.program_id(2)

    @pl.when(kdim == 0)
    def _():
        acc_ref[...] = jnp.zeros_like(acc_ref)

    acc_ref[...] += jnp.dot(d_ref[...], k_ref[...],
                            preferred_element_type=jnp.float32)

    @pl.when(kdim == pl.num_programs(2) - 1)
    def _():
        o_ref[...] = acc_ref[...].astype(o_ref.dtype)


def activity_transform(d, kmat, *, use_bf16=True):
    """d: (M, T-1) abs-diff of the piecewise-const approx; kmat: (T-1, T-1) Gaussian kernel."""
    M, C = d.shape
    C2, N = kmat.shape
    assert C == C2
    Mp, tm = _pad_and_tile(M, 8, 256)       # sublane axis
    Cp, tc = _pad_and_tile(C, 128, 512)     # contraction (lanes of d / sublanes of kmat)
    Np, tn = _pad_and_tile(N, 128, 512)     # output lanes -> lane-dense vst

    op_dt = jnp.bfloat16 if use_bf16 else jnp.float32
    d_p = jnp.zeros((Mp, Cp), op_dt).at[:M, :C].set(d.astype(op_dt))
    k_p = jnp.zeros((Cp, Np), op_dt).at[:C, :N].set(kmat.astype(op_dt))

    out = pl.pallas_call(
        _activity_kernel,
        out_shape=jax.ShapeDtypeStruct((Mp, Np), jnp.float32),
        grid=(Mp // tm, Np // tn, Cp // tc),
        in_specs=[pl.BlockSpec((tm, tc), lambda i, j, k: (i, k)),
                  pl.BlockSpec((tc, tn), lambda i, j, k: (k, j))],
        out_specs=pl.BlockSpec((tm, tn), lambda i, j, k: (i, j)),
        scratch_shapes=[pltpu.VMEM((tm, tn), jnp.float32)],
        compiler_params=pltpu.CompilerParams(
            dimension_semantics=("parallel", "parallel", "arbitrary"),
            vmem_limit_bytes=32 << 20),
        cost_estimate=pl.CostEstimate(
            flops=2 * Mp * Cp * Np,
            transcendentals=0,
            bytes_accessed=4 * (Mp * Cp + Cp * Np + Mp * Np)),
    )(d_p, k_p)
    return out[:M, :N]


# =====================================================================
# Pallas kernel 2: NMF via multiplicative updates (whole loop in-kernel)
#   H <- H * (W^T X) / (W^T W H + eps)
#   W <- W * (X H^T) / (W H H^T + eps)
# Transposes are expressed via dot_general dimension_numbers (no XLU transpose);
# divides are replaced by EUP reciprocals.
# =====================================================================
_DN_CONTRACT_FIRST = (((0,), (0,)), ((), ()))   # contract axis 0 of both operands (A^T B)
_DN_CONTRACT_LAST = (((1,), (1,)), ((), ()))    # contract axis 1 of both operands (A B^T)


def _make_nmf_kernel(n_iter, use_bf16):
    md = jnp.bfloat16 if use_bf16 else jnp.float32

    def kernel(x_ref, w0_ref, h0_ref, w_out_ref, h_out_ref):
        X = x_ref[...]
        Xm = X.astype(md)
        eps = jnp.float32(1e-9)

        def body(_, carry):
            W, H = carry
            Wm = W.astype(md)
            Hm = H.astype(md)
            # H update (uses old W, old H)
            WtX = lax.dot_general(Wm, Xm, _DN_CONTRACT_FIRST,
                                  preferred_element_type=jnp.float32)       # (K, N)
            WtW = lax.dot_general(Wm, Wm, _DN_CONTRACT_FIRST,
                                  preferred_element_type=jnp.float32)       # (K, K)
            WtWH = jnp.dot(WtW.astype(md), Hm,
                           preferred_element_type=jnp.float32)              # (K, N)
            H = H * WtX * pl.reciprocal(WtWH + eps, approx=True)
            # W update (uses old W, new H)
            Hm2 = H.astype(md)
            XHt = lax.dot_general(Xm, Hm2, _DN_CONTRACT_LAST,
                                  preferred_element_type=jnp.float32)       # (M, K)
            HHt = lax.dot_general(Hm2, Hm2, _DN_CONTRACT_LAST,
                                  preferred_element_type=jnp.float32)       # (K, K)
            WHHt = jnp.dot(Wm, HHt.astype(md),
                           preferred_element_type=jnp.float32)              # (M, K)
            W = W * XHt * pl.reciprocal(WHHt + eps, approx=True)
            return (W, H)

        W, H = lax.fori_loop(0, n_iter, body, (w0_ref[...], h0_ref[...]))
        w_out_ref[...] = W
        h_out_ref[...] = H

    return kernel


def nmf(x, w0, h0, *, n_iter=NMF_MAX_ITER, use_bf16=False):
    M, N = x.shape
    K = w0.shape[1]
    # Pad M and K to 8 sublanes, the time axis to 128 lanes. Zero padding is exact
    # under multiplicative updates (padded entries stay identically zero).
    Mp = _round_up(max(M, 8), 8)
    Kp = _round_up(max(K, 8), 8)
    Np = _round_up(N, 128)

    x_p = jnp.zeros((Mp, Np), jnp.float32).at[:M, :N].set(x.astype(jnp.float32))
    w_p = jnp.zeros((Mp, Kp), jnp.float32).at[:M, :K].set(w0.astype(jnp.float32))
    h_p = jnp.zeros((Kp, Np), jnp.float32).at[:K, :N].set(h0.astype(jnp.float32))

    flops_per_iter = 2.0 * (Mp * Kp * Np      # W^T X
                            + Mp * Kp * Kp    # W^T W
                            + Kp * Kp * Np    # (W^T W) H
                            + Mp * Np * Kp    # X H^T
                            + Kp * Np * Kp    # H H^T
                            + Mp * Kp * Kp)   # W (H H^T)
    ce = pl.CostEstimate(
        flops=int(n_iter * flops_per_iter),
        transcendentals=int(n_iter * (Kp * Np + Mp * Kp)),
        bytes_accessed=int(4 * (Mp * Np + 2 * (Mp * Kp + Kp * Np))),
    )

    w_out, h_out = pl.pallas_call(
        _make_nmf_kernel(n_iter, use_bf16),
        out_shape=(jax.ShapeDtypeStruct((Mp, Kp), jnp.float32),
                   jax.ShapeDtypeStruct((Kp, Np), jnp.float32)),
        grid=(1,),
        in_specs=[pl.BlockSpec((Mp, Np), lambda i: (0, 0)),
                  pl.BlockSpec((Mp, Kp), lambda i: (0, 0)),
                  pl.BlockSpec((Kp, Np), lambda i: (0, 0))],
        out_specs=(pl.BlockSpec((Mp, Kp), lambda i: (0, 0)),
                   pl.BlockSpec((Kp, Np), lambda i: (0, 0))),
        compiler_params=pltpu.CompilerParams(vmem_limit_bytes=32 << 20),
        cost_estimate=ce,
    )(x_p, w_p, h_p)
    # TODO(synk): batching multiple MCorr problems along the sublane/M axis into one NMF
    # call would amortize the 200 serial MXU-latency-bound iterations; single-problem here.
    return w_out[:M, :K], h_out[:K, :N]


# =====================================================================
# Plain-JAX glue: Haar piecewise-constant approximation (top-k details)
# =====================================================================
def haar_piecewise_const(x, n_keep):
    """x: (T,) with T a power of two. Keep the top-n_keep Haar detail coeffs."""
    sqrt2 = jnp.sqrt(jnp.float32(2.0))
    details = []
    approx = x
    while approx.shape[0] > 1:
        even, odd = approx[0::2], approx[1::2]
        details.append((even - odd) / sqrt2)
        approx = (even + odd) / sqrt2
    all_d = jnp.concatenate(details)                     # length T-1
    mag = jnp.abs(all_d)
    k = min(int(n_keep), int(all_d.shape[0]))
    thresh = jnp.sort(mag)[all_d.shape[0] - k]
    kept = jnp.where(mag >= thresh, all_d, jnp.float32(0.0))

    sizes = [int(d.shape[0]) for d in details]
    offs = np.cumsum([0] + sizes)
    rec = approx                                         # (1,)
    for lvl in reversed(range(len(details))):
        d = kept[offs[lvl]:offs[lvl + 1]]
        even = (rec + d) / sqrt2
        odd = (rec - d) / sqrt2
        rec = jnp.stack([even, odd], axis=1).reshape(-1)
    return rec


def gaussian_kernel_matrix(n, bandwidth):
    idx = jnp.arange(n, dtype=jnp.float32)
    K = jnp.exp(-0.5 * ((idx[:, None] - idx[None, :]) / jnp.float32(bandwidth)) ** 2)
    K = K / jnp.sum(K, axis=0, keepdims=True)
    return K.astype(jnp.float32)


def compute_activity_scores(metrics, max_events, wavelet_approx, bandwidth):
    M, T = metrics.shape
    # TODO(synk): wavelet_approx=False branch (exact changepoint DP) not implemented; Haar approx always used.
    apx = jax.vmap(haar_piecewise_const, in_axes=(0, None))(
        metrics.astype(jnp.float32), 2 * max_events)
    d = jnp.abs(apx[:, 1:] - apx[:, :-1])                # |diff| outside the kernel (fused by XLA)
    kmat = gaussian_kernel_matrix(T - 1, bandwidth)
    return activity_transform(d, kmat)


# =====================================================================
# jit-fused dense compute path: Haar -> activity matmul -> NMF.
# All plain-JAX glue compiles into one XLA program around the two pallas_calls
# instead of being eagerly dispatched op-by-op.
# =====================================================================
@partial(jax.jit, static_argnames=("max_events", "wavelet_approx", "bandwidth"))
def _mcorr_core(metrics, max_events, wavelet_approx, bandwidth):
    M, T = metrics.shape
    scores = compute_activity_scores(metrics, max_events, wavelet_approx, bandwidth)

    # Deterministic non-negative NMF initialization (synthetic, no checkpoint).
    k0, k1 = jax.random.split(jax.random.PRNGKey(1))
    W0 = jnp.abs(jax.random.normal(k0, (M, max_events), jnp.float32)) + 0.1
    H0 = jnp.abs(jax.random.normal(k1, (max_events, T - 1), jnp.float32)) + 0.1
    W, H = nmf(scores, W0, H0)
    return scores, W, H


# =====================================================================
# Plain-numpy glue: events (List[Dict[str, Tensor]] output)
# =====================================================================
def find_events(patterns, dt_pval):
    # TODO(synk): Hartigan dip-test significance filter (dt_pval) has no clean JAX/Pallas equivalent; all patterns kept.
    del dt_pval
    p_np = np.asarray(patterns)
    events = []
    for j in range(p_np.shape[0]):
        p = p_np[j]
        thresh = 0.5 * float(p.max())
        above = np.where(p >= thresh)[0]
        events.append({
            "event_window": jnp.asarray([int(above.min()), int(above.max()) + 1], dtype=jnp.int32),
            "event_pattern": jnp.asarray(p, dtype=jnp.float32),
            "_pattern_idx": j,
        })
    return events


def assign_metrics_to_events(events, activity_scores, loadings, omp_tol):
    # TODO(synk): orthogonal matching pursuit replaced by a loading-threshold assignment.
    del activity_scores
    w_np = np.asarray(loadings)
    out = []
    for ev in events:
        j = ev.pop("_pattern_idx")
        col = w_np[:, j]
        sel = np.where(col >= omp_tol * max(float(col.max()), 1e-12))[0]
        ev["suspected_metrics"] = jnp.asarray(sel, dtype=jnp.int32)
        out.append(ev)
    return out


# =====================================================================
# MCorr.forward equivalent
# =====================================================================
def mcorr_forward(metrics, max_events=5, wavelet_approx=True):
    M, T = metrics.shape
    if M >= T:
        raise ValueError("The number of metrics to correlate must be smaller than the "
                         "length of each time series.")
    max_events = min(max_events, M)
    bandwidth = float(max(T // 32, 1))

    scores, W, H = _mcorr_core(metrics, max_events, wavelet_approx, bandwidth)

    events = find_events(H, DT_PVAL)
    events = assign_metrics_to_events(events, scores, W, OMP_TOL)
    return events, scores, W, H


if __name__ == "__main__":
    key = jax.random.PRNGKey(0)
    M, T = 4, 64
    k_noise, _ = jax.random.split(key)
    noise = 0.1 * jax.random.normal(k_noise, (M, T), jnp.float32)

    t = jnp.arange(T)
    steps = jnp.stack([
        jnp.where((t >= 16) & (t < 32), 2.0, 0.0),
        jnp.where((t >= 40) & (t < 56), -1.5, 0.0),
        jnp.where((t >= 16) & (t < 32), 1.0, 0.0),
        jnp.zeros((T,)),
    ]).astype(jnp.float32)
    metrics = noise + steps                              # (M, T) = (4, 64)

    events, scores, W, H = mcorr_forward(metrics, max_events=5, wavelet_approx=True)
    jax.block_until_ready(scores)
    jax.block_until_ready(W)
    jax.block_until_ready(H)
    for ev in events:
        jax.block_until_ready(ev["event_pattern"])

    assert scores.shape == (M, T - 1)
    assert W.shape == (M, min(5, M)) and H.shape == (min(5, M), T - 1)
    assert bool(jnp.all(jnp.isfinite(scores))) and bool(jnp.all(jnp.isfinite(H)))
    assert bool(jnp.all(jnp.isfinite(W))) and bool(jnp.all(W >= 0)) and bool(jnp.all(H >= 0))
    print("KERNEL_OK")
</pallas_src>

<mosaic_0001>
module attributes {stable_mosaic.version = 11 : i64} {
  func.func @_activity_kernel(%arg0: i32, %arg1: i32, %arg2: i32, %arg3: memref<8x128xbf16, #tpu.memory_space<vmem>>, %arg4: memref<128x128xbf16, #tpu.memory_space<vmem>>, %arg5: memref<8x128xf32, #tpu.memory_space<vmem>>, %arg6: memref<8x128xf32, #tpu.memory_space<vmem>>) attributes {dimension_semantics = [#tpu.dimension_semantics<parallel>, #tpu.dimension_semantics<parallel>, #tpu.dimension_semantics<arbitrary>], iteration_bounds = array<i64: 1, 1, 1>, scalar_prefetch = 0 : i64, scratch_operands = 1 : i64, tpu.core_type = #tpu.core_type<tc>, window_params = [{transform_indices = @transform_0, window_bounds = array<i64: 8, 128>}, {transform_indices = @transform_1, window_bounds = array<i64: 128, 128>}, {transform_indices = @transform_2, window_bounds = array<i64: 8, 128>}]} {
    %c0_i32 = arith.constant 0 : i32
    %0 = arith.cmpi eq, %arg2, %c0_i32 : i32
    %1 = arith.extui %0 : i1 to i32
    %c0_i32_0 = arith.constant 0 : i32
    %2 = arith.cmpi ne, %1, %c0_i32_0 : i32
    scf.if %2 {
      %cst_10 = arith.constant 0.000000e+00 : f32
      %12 = vector.broadcast %cst_10 : f32 to vector<8x128xf32>
      %c0_11 = arith.constant 0 : index
      %c0_12 = arith.constant 0 : index
      %13 = vector.load %arg6[%c0_11, %c0_12] : memref<8x128xf32, #tpu.memory_space<vmem>>, vector<8x128xf32>
      tpu.vector_store %arg6[%c0_11, %c0_12], %12 {strides = array<i32>} : memref<8x128xf32, #tpu.memory_space<vmem>>, vector<8x128xf32>,
    } else {
    }
    %c0 = arith.constant 0 : index
    %c0_1 = arith.constant 0 : index
    %3 = vector.load %arg6[%c0, %c0_1] : memref<8x128xf32, #tpu.memory_space<vmem>>, vector<8x128xf32>
    %c0_2 = arith.constant 0 : index
    %c0_3 = arith.constant 0 : index
    %4 = vector.load %arg3[%c0_2, %c0_3] : memref<8x128xbf16, #tpu.memory_space<vmem>>, vector<8x128xbf16>
    %c0_4 = arith.constant 0 : index
    %c0_5 = arith.constant 0 : index
    %5 = vector.load %arg4[%c0_4, %c0_5] : memref<128x128xbf16, #tpu.memory_space<vmem>>, vector<128x128xbf16>
    %cst = arith.constant dense<0.000000e+00> : vector<8x128xf32>
    %6 = tpu.matmul %4, %5, %cst {dimension_numbers = #tpu.dot_dimension_numbers<[1], [0], [0], [1], [0, 0, 1, 1], [], []>} : vector<8x128xbf16>, vector<128x128xbf16>, vector<8x128xf32> -> vector<8x128xf32>
    %7 = arith.addf %3, %6 : vector<8x128xf32>
    %c0_6 = arith.constant 0 : index
    %c0_7 = arith.constant 0 : index
    %8 = vector.load %arg6[%c0_6, %c0_7] : memref<8x128xf32, #tpu.memory_space<vmem>>, vector<8x128xf32>
    tpu.vector_store %arg6[%c0_6, %c0_7], %7 {strides = array<i32>} : memref<8x128xf32, #tpu.memory_space<vmem>>, vector<8x128xf32>,
    %c0_i32_8 = arith.constant 0 : i32
    %9 = arith.cmpi eq, %arg2, %c0_i32_8 : i32
    %10 = arith.extui %9 : i1 to i32
    %c0_i32_9 = arith.constant 0 : i32
    %11 = arith.cmpi ne, %10, %c0_i32_9 : i32
    scf.if %11 {
      %c0_10 = arith.constant 0 : index
      %c0_11 = arith.constant 0 : index
      %12 = vector.load %arg6[%c0_10, %c0_11] : memref<8x128xf32, #tpu.memory_space<vmem>>, vector<8x128xf32>
      %c0_12 = arith.constant 0 : index
      %c0_13 = arith.constant 0 : index
      %13 = vector.load %arg5[%c0_12, %c0_13] : memref<8x128xf32, #tpu.memory_space<vmem>>, vector<8x128xf32>
      tpu.vector_store %arg5[%c0_12, %c0_13], %12 {strides = array<i32>} : memref<8x128xf32, #tpu.memory_space<vmem>>, vector<8x128xf32>,
    } else {
    }
    return
  }
  func.func @transform_0(%arg0: i32, %arg1: i32, %arg2: i32) -> (i32, i32) {
    %c0_i32 = arith.constant 0 : i32
    return %arg0, %arg2 : i32, i32
  }
  func.func @transform_1(%arg0: i32, %arg1: i32, %arg2: i32) -> (i32, i32) {
    %c0_i32 = arith.constant 0 : i32
    return %arg2, %arg1 : i32, i32
  }
  func.func @transform_2(%arg0: i32, %arg1: i32, %arg2: i32) -> (i32, i32) {
    %c0_i32 = arith.constant 0 : i32
    return %arg0, %arg1 : i32, i32
  }
}

module attributes {stable_mosaic.version = 11 : i64} {
  func.func @kernel(%arg0: i32, %arg1: memref<8x128xf32, #tpu.memory_space<vmem>>, %arg2: memref<8x8xf32, #tpu.memory_space<vmem>>, %arg3: memref<8x128xf32, #tpu.memory_space<vmem>>, %arg4: memref<8x8xf32, #tpu.memory_space<vmem>>, %arg5: memref<8x128xf32, #tpu.memory_space<vmem>>) attributes {dimension_semantics = [#tpu.dimension_semantics<arbitrary>], iteration_bounds = array<i64: 1>, scalar_prefetch = 0 : i64, scratch_operands = 0 : i64, tpu.core_type = #tpu.core_type<tc>, window_params = [{pipeline_mode = #tpu.pipeline_mode<synchronous>, transform_indices = @transform_0, window_bounds = array<i64: 8, 128>}, {pipeline_mode = #tpu.pipeline_mode<synchronous>, transform_indices = @transform_1, window_bounds = array<i64: 8, 8>}, {pipeline_mode = #tpu.pipeline_mode<synchronous>, transform_indices = @transform_2, window_bounds = array<i64: 8, 128>}, {pipeline_mode = #tpu.pipeline_mode<synchronous>, transform_indices = @transform_3, window_bounds = array<i64: 8, 8>}, {pipeline_mode = #tpu.pipeline_mode<synchronous>, transform_indices = @transform_4, window_bounds = array<i64: 8, 128>}]} {
    %c0 = arith.constant 0 : index
    %c0_0 = arith.constant 0 : index
    %0 = vector.load %arg1[%c0, %c0_0] : memref<8x128xf32, #tpu.memory_space<vmem>>, vector<8x128xf32>
    %c0_1 = arith.constant 0 : index
    %c0_2 = arith.constant 0 : index
    %1 = vector.load %arg2[%c0_1, %c0_2] : memref<8x8xf32, #tpu.memory_space<vmem>>, vector<8x8xf32>
    %c0_3 = arith.constant 0 : index
    %c0_4 = arith.constant 0 : index
    %2 = vector.load %arg3[%c0_3, %c0_4] : memref<8x128xf32, #tpu.memory_space<vmem>>, vector<8x128xf32>
    %cst = arith.constant 9.99999971E-10 : f32
    %c0_i32 = arith.constant 0 : i32
    %c200_i32 = arith.constant 200 : i32
    %3 = arith.addi %c0_i32, %c200_i32 : i32
    %c1_i32 = arith.constant 1 : i32
    %4:2 = scf.for %arg6 = %c0_i32 to %3 step %c1_i32 iter_args(%arg7 = %1, %arg8 = %2) -> (vector<8x8xf32>, vector<8x128xf32>)  : i32 {
      %cst_9 = arith.constant dense<0.000000e+00> : vector<8x128xf32>
      %7 = tpu.matmul %arg7, %0, %cst_9 {dimension_numbers = #tpu.dot_dimension_numbers<[0], [0], [1], [1], [0, 1, 1, 1], [], []>} : vector<8x8xf32>, vector<8x128xf32>, vector<8x128xf32> -> vector<8x128xf32>
      %cst_10 = arith.constant dense<0.000000e+00> : vector<8x8xf32>
      %8 = tpu.matmul %arg7, %arg7, %cst_10 {dimension_numbers = #tpu.dot_dimension_numbers<[0], [0], [1], [1], [0, 1, 1, 1], [], []>} : vector<8x8xf32>, vector<8x8xf32>, vector<8x8xf32> -> vector<8x8xf32>
      %cst_11 = arith.constant dense<0.000000e+00> : vector<8x128xf32>
      %9 = tpu.matmul %8, %arg8, %cst_11 {dimension_numbers = #tpu.dot_dimension_numbers<[1], [0], [0], [1], [0, 0, 1, 1], [], []>} : vector<8x8xf32>, vector<8x128xf32>, vector<8x128xf32> -> vector<8x128xf32>
      %10 = arith.mulf %arg8, %7 : vector<8x128xf32>
      %11 = vector.broadcast %cst : f32 to vector<8x128xf32>
      %12 = arith.addf %9, %11 : vector<8x128xf32>
      %13 = tpu.reciprocal %12 {approx = true} : vector<8x128xf32> -> vector<8x128xf32>
      %14 = arith.mulf %10, %13 : vector<8x128xf32>
      %cst_12 = arith.constant dense<0.000000e+00> : vector<8x8xf32>
      %15 = tpu.matmul %0, %14, %cst_12 {dimension_numbers = #tpu.dot_dimension_numbers<[1], [1], [0], [0], [0, 0, 1, 0], [], []>} : vector<8x128xf32>, vector<8x128xf32>, vector<8x8xf32> -> vector<8x8xf32>
      %cst_13 = arith.constant dense<0.000000e+00> : vector<8x8xf32>
      %16 = tpu.matmul %14, %14, %cst_13 {dimension_numbers = #tpu.dot_dimension_numbers<[1], [1], [0], [0], [0, 0, 1, 0], [], []>} : vector<8x128xf32>, vector<8x128xf32>, vector<8x8xf32> -> vector<8x8xf32>
      %cst_14 = arith.constant dense<0.000000e+00> : vector<8x8xf32>
      %17 = tpu.matmul %arg7, %16, %cst_14 {dimension_numbers = #tpu.dot_dimension_numbers<[1], [0], [0], [1], [0, 0, 1, 1], [], []>} : vector<8x8xf32>, vector<8x8xf32>, vector<8x8xf32> -> vector<8x8xf32>
      %18 = arith.mulf %arg7, %15 : vector<8x8xf32>
      %19 = vector.broadcast %cst : f32 to vector<8x8xf32>
      %20 = arith.addf %17, %19 : vector<8x8xf32>
      %21 = tpu.reciprocal %20 {approx = true} : vector<8x8xf32> -> vector<8x8xf32>
      %22 = arith.mulf %18, %21 : vector<8x8xf32>
      scf.yield %22, %14 : vector<8x8xf32>, vector<8x128xf32>
    }
    %c0_5 = arith.constant 0 : index
    %c0_6 = arith.constant 0 : index
    %5 = vector.load %arg4[%c0_5, %c0_6] : memref<8x8xf32, #tpu.memory_space<vmem>>, vector<8x8xf32>
    tpu.vector_store %arg4[%c0_5, %c0_6], %4#0 {strides = array<i32>} : memref<8x8xf32, #tpu.memory_space<vmem>>, vector<8x8xf32>,
    %c0_7 = arith.constant 0 : index
    %c0_8 = arith.constant 0 : index
    %6 = vector.load %arg5[%c0_7, %c0_8] : memref<8x128xf32, #tpu.memory_space<vmem>>, vector<8x128xf32>
    tpu.vector_store %arg5[%c0_7, %c0_8], %4#1 {strides = array<i32>} : memref<8x128xf32, #tpu.memory_space<vmem>>, vector<8x128xf32>,
    return
  }
  func.func @transform_0(%arg0: i32) -> (i32, i32) {
    %c0_i32 = arith.constant 0 : i32
    %c0_i32_0 = arith.constant 0 : i32
    %c0_i32_1 = arith.constant 0 : i32
    return %c0_i32, %c0_i32_0 : i32, i32
  }
  func.func @transform_1(%arg0: i32) -> (i32, i32) {
    %c0_i32 = arith.constant 0 : i32
    %c0_i32_0 = arith.constant 0 : i32
    %c0_i32_1 = arith.constant 0 : i32
    return %c0_i32, %c0_i32_0 : i32, i32
  }
  func.func @transform_2(%arg0: i32) -> (i32, i32) {
    %c0_i32 = arith.constant 0 : i32
    %c0_i32_0 = arith.constant 0 : i32
    %c0_i32_1 = arith.constant 0 : i32
    return %c0_i32, %c0_i32_0 : i32, i32
  }
  func.func @transform_3(%arg0: i32) -> (i32, i32) {
    %c0_i32 = arith.constant 0 : i32
    %c0_i32_0 = arith.constant 0 : i32
    %c0_i32_1 = arith.constant 0 : i32
    return %c0_i32, %c0_i32_0 : i32, i32
  }
  func.func @transform_4(%arg0: i32) -> (i32, i32) {
    %c0_i32 = arith.constant 0 : i32
    %c0_i32_0 = arith.constant 0 : i32
    %c0_i32_1 = arith.constant 0 : i32
    return %c0_i32, %c0_i32_0 : i32, i32
  }
}

</mosaic_0001>

<llo_original>
// kernel: _mcorr_core.4
$region0: #{_mcorr_core.4}
  #allocation0 [shape = 'u32[]', space=smem, size = 0x4, offset = 0x4, fixed_abs, tag = 'smem constant byte address 0x4 - core index']
  #allocation1 [shape = 'u32[144,128]{1,0:T(1,128)}', space=vmem, size = 0x12000, scoped, tag = 'internal scratch']
  #allocation2 [shape = 'f32[8,128]{1,0:T(8,128)}', space=vmem, size = 0x1000, scoped, tag = 'scratch operand']
  %s0 = inlined_call_operand.vmem [shape: bf16[8,128], index: 0, kind: input, shape index: {}]
  %s1 = inlined_call_operand.vmem [shape: bf16[128,128], index: 1, kind: input, shape index: {}]
  %s2 = inlined_call_operand.vmem [shape: f32[8,128], index: 2, kind: output, shape index: {}]
  %s3 = sld [smem:[#allocation0]]
  $region26: #{_mcorr_core.4} parent=0
    _
  %s5 = ssub.s32 1, %s3
  %s6 = scalar_select 0, %s5, %s3
  // Predicated region
  $region2: #{_mcorr_core.4} parent=0 // pred_check
    _
  $region3: #{_mcorr_core.4} parent=0 // pred_check_branch
    %8 = sbr.rel (0) target = $region5
  $region4: #{_mcorr_core.4} parent=0 // pred_region
    _
  $region5: #{_mcorr_core.4} parent=0 // pred_fallthru
    _
  // Predicated region
  $region6: #{_mcorr_core.4} parent=0 // pred_check
    _
  $region7: #{_mcorr_core.4} parent=0 // pred_check_branch
    %10 = sbr.rel (0) target = $region9
  $region8: #{_mcorr_core.4} parent=0 // pred_region
    _
  $region9: #{_mcorr_core.4} parent=0 // pred_fallthru
    _
  %p12 = scmp.eq.s32.totalorder 0, 0
  // Predicated region
  $region10: #{_mcorr_core.4} parent=0 // pred_check
    %p13 = pneg %p12
  $region11: #{_mcorr_core.4} parent=0 // pred_check_branch
    %15 = sbr.rel (%p13) target = $region13
  $region12: #{_mcorr_core.4} parent=0 // pred_region
    %16 = vst [vmem:[#allocation2] sm:$0xff] 0.0
  $region13: #{_mcorr_core.4} parent=0 // pred_fallthru
    _
  %v17 = vld [vmem:[#allocation2] sm:$0xff]
  %v18 = vld [vmem:[%s0] sm:$0xf]
  %v19 = vld [vmem:[%s1] sm:$0xf]
  %v20 = vld [vmem:[%s1 + $0x4] sm:$0xf]
  %v21 = vld [vmem:[%s1 + $0x8] sm:$0xf]
  %v22 = vld [vmem:[%s1 + $0xc] sm:$0xf]
  %v23 = vld [vmem:[%s1 + $0x10] sm:$0xf]
  %v24 = vld [vmem:[%s1 + $0x14] sm:$0xf]
  %v25 = vld [vmem:[%s1 + $0x18] sm:$0xf]
  %v26 = vld [vmem:[%s1 + $0x1c] sm:$0xf]
  %v27 = vld [vmem:[%s1 + $0x20] sm:$0xf]
  %v28 = vld [vmem:[%s1 + $0x24] sm:$0xf]
  %v29 = vld [vmem:[%s1 + $0x28] sm:$0xf]
  %v30 = vld [vmem:[%s1 + $0x2c] sm:$0xf]
  %v31 = vld [vmem:[%s1 + $0x30] sm:$0xf]
  %v32 = vld [vmem:[%s1 + $0x34] sm:$0xf]
  %v33 = vld [vmem:[%s1 + $0x38] sm:$0xf]
  %v34 = vld [vmem:[%s1 + $0x3c] sm:$0xf]
  %v51 = vunpack.c.l.b16 %v19
  %v52 = vunpack.c.l.b16 %v20
  %v53 = vunpack.c.l.b16 %v21
  %v54 = vunpack.c.l.b16 %v22
  %v55 = vunpack.c.l.b16 %v23
  %v56 = vunpack.c.l.b16 %v24
  %v57 = vunpack.c.l.b16 %v25
  %v58 = vunpack.c.l.b16 %v26
  %v59 = vunpack.c.l.b16 %v27
  %v60 = vunpack.c.l.b16 %v28
  %v61 = vunpack.c.l.b16 %v29
  %v62 = vunpack.c.l.b16 %v30
  %v63 = vunpack.c.l.b16 %v31
  %v64 = vunpack.c.l.b16 %v32
  %v65 = vunpack.c.l.b16 %v33
  %v66 = vunpack.c.l.b16 %v34
  %v67 = vpack.c.b16 %v52, %v51
  %v68 = vpack.c.b16 %v54, %v53
  %v69 = vpack.c.b16 %v56, %v55
  %v70 = vpack.c.b16 %v58, %v57
  %v71 = vpack.c.b16 %v60, %v59
  %v72 = vpack.c.b16 %v62, %v61
  %v73 = vpack.c.b16 %v64, %v63
  %v74 = vpack.c.b16 %v66, %v65
  %83 = vmatprep.subr.bf16.mxu0 0
  %84 = vmatpush1.bf16.msra.mxu0 %v67
  %85 = vmatprep.subr.bf16.mxu0 0
  %86 = vmatpush1.bf16.msra.mxu0 %v68
  %87 = vmatprep.subr.bf16.mxu0 0
  %88 = vmatpush1.bf16.msra.mxu0 %v69
  %89 = vmatprep.subr.bf16.mxu0 0
  %90 = vmatpush1.bf16.msra.mxu0 %v70
  %91 = vmatprep.subr.bf16.mxu0 0
  %92 = vmatpush1.bf16.msra.mxu0 %v71
  %93 = vmatprep.subr.bf16.mxu0 0
  %94 = vmatpush1.bf16.msra.mxu0 %v72
  %95 = vmatprep.subr.bf16.mxu0 0
  %96 = vmatpush1.bf16.msra.mxu0 %v73
  %97 = vmatprep.subr.bf16.mxu0 0
  %98 = vmatpush1.bf16.msra.mxu0 %v74
  %99 = vmatprep.subr.bf16.mxu0 0
  %100 = vmatpush1.bf16.msra.mxu0 0
  %101 = vmatprep.subr.bf16.mxu0 0
  %102 = vmatpush1.bf16.msra.mxu0 0
  %103 = vmatprep.subr.bf16.mxu0 0
  %104 = vmatpush1.bf16.msra.mxu0 0
  %105 = vmatprep.subr.bf16.mxu0 0
  %106 = vmatpush1.bf16.msra.mxu0 0
  %107 = vmatprep.subr.bf16.mxu0 0
  %108 = vmatpush1.bf16.msra.mxu0 0
  %109 = vmatprep.subr.bf16.mxu0 0
  %110 = vmatpush1.bf16.msra.mxu0 0
  %111 = vmatprep.subr.bf16.mxu0 0
  %112 = vmatpush1.bf16.msra.mxu0 0
  %113 = vmatprep.subr.bf16.mxu0 0
  %114 = vmatpush1.bf16.msra.mxu0 0
  %115 = vmatprep.mubr.bf16.mxu0 0
  %116 = vmatmul.mubr.bf16.gmra.mrb[0].mxu0 %v18
  %v117 = vpop.f32.mrb[0].mxu0
  %v118 = vadd.f32 0.0, %v117
  %v119 = vpop.f32.mrb[0].mxu0
  %v120 = vpop.f32.mrb[0].mxu0
  %v121 = vpop.f32.mrb[0].mxu0
  %122 = vdwg.mxu0
  %v123 = vadd.f32 %v17, %v118
  %124 = vst [vmem:[#allocation2] sm:$0xff] %v123
  // Predicated region
  $region14: #{_mcorr_core.4} parent=0 // pred_check
    %p125 = pneg %p12
  $region15: #{_mcorr_core.4} parent=0 // pred_check_branch
    %127 = sbr.rel (%p125) target = $region17
  $region16: #{_mcorr_core.4} parent=0 // pred_region
    %v128 = vld [vmem:[#allocation2] sm:$0xff]
    %129 = vst [vmem:[%s2] sm:$0xff] %v128
  $region17: #{_mcorr_core.4} parent=0 // pred_fallthru
    _
  // Predicated region
  $region18: #{_mcorr_core.4} parent=0 // pred_check
    _
  $region19: #{_mcorr_core.4} parent=0 // pred_check_branch
    %131 = sbr.rel (0) target = $region21
  $region20: #{_mcorr_core.4} parent=0 // pred_region
    _
  $region21: #{_mcorr_core.4} parent=0 // pred_fallthru
    _
  // Predicated region
  $region22: #{_mcorr_core.4} parent=0 // pred_check
    _
  $region23: #{_mcorr_core.4} parent=0 // pred_check_branch
    %133 = sbr.rel (0) target = $region25
  $region24: #{_mcorr_core.4} parent=0 // pred_region
    _
  $region25: #{_mcorr_core.4} parent=0 // pred_fallthru
    _

// kernel: _mcorr_core.5
$region0: #{_mcorr_core.5}
  #allocation0 [shape = 'u32[]', space=smem, size = 0x4, offset = 0x4, fixed_abs, tag = 'smem constant byte address 0x4 - core index']
  #allocation1 [shape = 'u32[144,128]{1,0:T(1,128)}', space=vmem, size = 0x12000, scoped, tag = 'internal scratch']
  %s0 = inlined_call_operand.vmem [shape: f32[8,128], index: 0, kind: input, shape index: {}]
  %s1 = inlined_call_operand.vmem [shape: f32[8,8], index: 1, kind: input, shape index: {}]
  %s2 = inlined_call_operand.vmem [shape: f32[8,128], index: 2, kind: input, shape index: {}]
  %s3 = inlined_call_operand.vmem [shape: f32[8,8], index: 3, kind: output, shape index: {0}]
  %s4 = inlined_call_operand.vmem [shape: f32[8,128], index: 4, kind: output, shape index: {1}]
  %5 = xla_tuple %s3, %s4
  %s6 = sld [smem:[#allocation0]]
  $region37: #{_mcorr_core.5} parent=0
    _
  %s8 = ssub.s32 1, %s6
  %s9 = scalar_select 0, %s8, %s6
  // Predicated region
  $region2: #{_mcorr_core.5} parent=0 // pred_check
    _
  $region3: #{_mcorr_core.5} parent=0 // pred_check_branch
    %11 = sbr.rel (0) target = $region5
  $region4: #{_mcorr_core.5} parent=0 // pred_region
    _
  $region5: #{_mcorr_core.5} parent=0 // pred_fallthru
    _
  // Predicated region
  $region6: #{_mcorr_core.5} parent=0 // pred_check
    _
  $region7: #{_mcorr_core.5} parent=0 // pred_check_branch
    %13 = sbr.rel (0) target = $region9
  $region8: #{_mcorr_core.5} parent=0 // pred_region
    _
  $region9: #{_mcorr_core.5} parent=0 // pred_fallthru
    _
  // Predicated region
  $region10: #{_mcorr_core.5} parent=0 // pred_check
    _
  $region11: #{_mcorr_core.5} parent=0 // pred_check_branch
    %15 = sbr.rel (0) target = $region13
  $region12: #{_mcorr_core.5} parent=0 // pred_region
    _
  $region13: #{_mcorr_core.5} parent=0 // pred_fallthru
    _
  %v16 = vld [vmem:[%s0] sm:$0xff]
  %v17 = vld [vmem:[%s1] sm:$0xff]
  %v18 = vld [vmem:[%s2] sm:$0xff]
  loop: start=0, step=1, limit=200
  $region14: #{_mcorr_core.5} parent=0 // loop_pre_header
    _
  $region15: #{_mcorr_core.5} parent=0 // loop_header
    %s20 = sphi 0, %s24
    %p21 = scmp.ge.s32.totalorder %s20, 200
    %v25 = vphi %v17, %v494
    %v26 = vphi %v18, %v278
  $region16: #{_mcorr_core.5} parent=0 // loop_header_branch
    %23 = sbr.rel (%p21) target = $region20
  $region17: #{_mcorr_core.5} parent=0 // loop_body
    %27 = vxpose.xlu0.b32.start [1/16] %v25, 128
    %28 = vxpose.xlu0.b32.cont [2/16] 0.0, 128
    %29 = vxpose.xlu0.b32.cont [3/16] 0.0, 128
    %30 = vxpose.xlu0.b32.cont [4/16] 0.0, 128
    %31 = vxpose.xlu0.b32.cont [5/16] 0.0, 128
    %32 = vxpose.xlu0.b32.cont [6/16] 0.0, 128
    %33 = vxpose.xlu0.b32.cont [7/16] 0.0, 128
    %34 = vxpose.xlu0.b32.cont [8/16] 0.0, 128
    %35 = vxpose.xlu0.b32.cont [9/16] 0.0, 128
    %36 = vxpose.xlu0.b32.cont [10/16] 0.0, 128
    %37 = vxpose.xlu0.b32.cont [11/16] 0.0, 128
    %38 = vxpose.xlu0.b32.cont [12/16] 0.0, 128
    %39 = vxpose.xlu0.b32.cont [13/16] 0.0, 128
    %40 = vxpose.xlu0.b32.cont [14/16] 0.0, 128
    %41 = vxpose.xlu0.b32.cont [15/16] 0.0, 128
    %42 = vxpose.xlu0.b32.end [16/16] 0.0, 128
    %v43 = vpop.trf.xlu0
    %v44 = vpop.trf.xlu0
    %v45 = vpop.trf.xlu0
    %v46 = vpop.trf.xlu0
    %v47 = vpop.trf.xlu0
    %v48 = vpop.trf.xlu0
    %v49 = vpop.trf.xlu0
    %v50 = vpop.trf.xlu0
    %v51 = vpop.trf.xlu0
    %v52 = vpop.trf.xlu0
    %v53 = vpop.trf.xlu0
    %v54 = vpop.trf.xlu0
    %v55 = vpop.trf.xlu0
    %v56 = vpop.trf.xlu0
    %v57 = vpop.trf.xlu0
    %v58 = vpop.trf.xlu0
    %vm59 = vcmask 64512
    %v61 = vsel %vm59, %v43, 0
    %63 = vmatprep.subr.mxu0 0.0
    %64 = vmatpush1.msra.mxu0 %v16
    %65 = vmatprep.subr.mxu0 0.0
    %66 = vmatpush1.msra.mxu0 0.0
    %67 = vmatprep.subr.mxu0 0.0
    %68 = vmatpush1.msra.mxu0 0.0
    %69 = vmatprep.subr.mxu0 0.0
    %70 = vmatpush1.msra.mxu0 0.0
    %71 = vmatprep.subr.mxu0 0.0
    %72 = vmatpush1.msra.mxu0 0.0
    %73 = vmatprep.subr.mxu0 0.0
    %74 = vmatpush1.msra.mxu0 0.0
    %75 = vmatprep.subr.mxu0 0.0
    %76 = vmatpush1.msra.mxu0 0.0
    %77 = vmatprep.subr.mxu0 0.0
    %78 = vmatpush1.msra.mxu0 0.0
    %79 = vmatprep.subr.mxu0 0.0
    %80 = vmatpush1.msra.mxu0 0.0
    %81 = vmatprep.subr.mxu0 0.0
    %82 = vmatpush1.msra.mxu0 0.0
    %83 = vmatprep.subr.mxu0 0.0
    %84 = vmatpush1.msra.mxu0 0.0
    %85 = vmatprep.subr.mxu0 0.0
    %86 = vmatpush1.msra.mxu0 0.0
    %87 = vmatprep.subr.mxu0 0.0
    %88 = vmatpush1.msra.mxu0 0.0
    %89 = vmatprep.subr.mxu0 0.0
    %90 = vmatpush1.msra.mxu0 0.0
    %91 = vmatprep.subr.mxu0 0.0
    %92 = vmatpush1.msra.mxu0 0.0
    %93 = vmatprep.subr.mxu0 0.0
    %94 = vmatpush1.msra.mxu0 0.0
    %95 = vmatprep.subr.mxu0 0.0
    %96 = vmatpush1.msra.mxu0 0.0
    %97 = vmatprep.subr.mxu0 0.0
    %98 = vmatpush1.msra.mxu0 0.0
    %99 = vmatprep.subr.mxu0 0.0
    %100 = vmatpush1.msra.mxu0 0.0
    %101 = vmatprep.subr.mxu0 0.0
    %102 = vmatpush1.msra.mxu0 0.0
    %103 = vmatprep.subr.mxu0 0.0
    %104 = vmatpush1.msra.mxu0 0.0
    %105 = vmatprep.subr.mxu0 0.0
    %106 = vmatpush1.msra.mxu0 0.0
    %107 = vmatprep.subr.mxu0 0.0
    %108 = vmatpush1.msra.mxu0 0.0
    %109 = vmatprep.subr.mxu0 0.0
    %110 = vmatpush1.msra.mxu0 0.0
    %111 = vmatprep.subr.mxu0 0.0
    %112 = vmatpush1.msra.mxu0 0.0
    %113 = vmatprep.subr.mxu0 0.0
    %114 = vmatpush1.msra.mxu0 0.0
    %115 = vmatprep.subr.mxu0 0.0
    %116 = vmatpush1.msra.mxu0 0.0
    %117 = vmatprep.subr.mxu0 0.0
    %118 = vmatpush1.msra.mxu0 0.0
    %119 = vmatprep.subr.mxu0 0.0
    %120 = vmatpush1.msra.mxu0 0.0
    %121 = vmatprep.subr.mxu0 0.0
    %122 = vmatpush1.msra.mxu0 0.0
    %123 = vmatprep.subr.mxu0 0.0
    %124 = vmatpush1.msra.mxu0 0.0
    %125 = vmatprep.subr.mxu0 0.0
    %126 = vmatpush1.msra.mxu0 0.0
    %127 = vmatprep.mubr.f32.mxu0 0.0
    %128 = vmatmul.mubr.f32.gmra.mrb[0].mxu0 %v61
    %v129 = vpop.f32.mrb[0].mxu0
    %v130 = vadd.f32 0.0, %v129
    %v131 = vpop.f32.mrb[0].mxu0
    %132 = vdwg.mxu0
    %133 = vmatprep.subr.mxu0 0.0
    %134 = vmatpush1.msra.mxu0 %v25
    %135 = vmatprep.subr.mxu0 0.0
    %136 = vmatpush1.msra.mxu0 0.0
    %137 = vmatprep.subr.mxu0 0.0
    %138 = vmatpush1.msra.mxu0 0.0
    %139 = vmatprep.subr.mxu0 0.0
    %140 = vmatpush1.msra.mxu0 0.0
    %141 = vmatprep.subr.mxu0 0.0
    %142 = vmatpush1.msra.mxu0 0.0
    %143 = vmatprep.subr.mxu0 0.0
    %144 = vmatpush1.msra.mxu0 0.0
    %145 = vmatprep.subr.mxu0 0.0
    %146 = vmatpush1.msra.mxu0 0.0
    %147 = vmatprep.subr.mxu0 0.0
    %148 = vmatpush1.msra.mxu0 0.0
    %149 = vmatprep.subr.mxu0 0.0
    %150 = vmatpush1.msra.mxu0 0.0
    %151 = vmatprep.subr.mxu0 0.0
    %152 = vmatpush1.msra.mxu0 0.0
    %153 = vmatprep.subr.mxu0 0.0
    %154 = vmatpush1.msra.mxu0 0.0
    %155 = vmatprep.subr.mxu0 0.0
    %156 = vmatpush1.msra.mxu0 0.0
    %157 = vmatprep.subr.mxu0 0.0
    %158 = vmatpush1.msra.mxu0 0.0
    %159 = vmatprep.subr.mxu0 0.0
    %160 = vmatpush1.msra.mxu0 0.0
    %161 = vmatprep.subr.mxu0 0.0
    %162 = vmatpush1.msra.mxu0 0.0
    %163 = vmatprep.subr.mxu0 0.0
    %164 = vmatpush1.msra.mxu0 0.0
    %165 = vmatprep.subr.mxu0 0.0
    %166 = vmatpush1.msra.mxu0 0.0
    %167 = vmatprep.subr.mxu0 0.0
    %168 = vmatpush1.msra.mxu0 0.0
    %169 = vmatprep.subr.mxu0 0.0
    %170 = vmatpush1.msra.mxu0 0.0
    %171 = vmatprep.subr.mxu0 0.0
    %172 = vmatpush1.msra.mxu0 0.0
    %173 = vmatprep.subr.mxu0 0.0
    %174 = vmatpush1.msra.mxu0 0.0
    %175 = vmatprep.subr.mxu0 0.0
    %176 = vmatpush1.msra.mxu0 0.0
    %177 = vmatprep.subr.mxu0 0.0
    %178 = vmatpush1.msra.mxu0 0.0
    %179 = vmatprep.subr.mxu0 0.0
    %180 = vmatpush1.msra.mxu0 0.0
    %181 = vmatprep.subr.mxu0 0.0
    %182 = vmatpush1.msra.mxu0 0.0
    %183 = vmatprep.subr.mxu0 0.0
    %184 = vmatpush1.msra.mxu0 0.0
    %185 = vmatprep.subr.mxu0 0.0
    %186 = vmatpush1.msra.mxu0 0.0
    %187 = vmatprep.subr.mxu0 0.0
    %188 = vmatpush1.msra.mxu0 0.0
    %189 = vmatprep.subr.mxu0 0.0
    %190 = vmatpush1.msra.mxu0 0.0
    %191 = vmatprep.subr.mxu0 0.0
    %192 = vmatpush1.msra.mxu0 0.0
    %193 = vmatprep.subr.mxu0 0.0
    %194 = vmatpush1.msra.mxu0 0.0
    %195 = vmatprep.subr.mxu0 0.0
    %196 = vmatpush1.msra.mxu0 0.0
    %197 = vmatprep.mubr.f32.mxu0 0.0
    %198 = vmatmul.mubr.f32.gmra.mrb[0].mxu0 %v61
    %v199 = vpop.f32.mrb[0].mxu0
    %v200 = vadd.f32 0.0, %v199
    %v201 = vpop.f32.mrb[0].mxu0
    %202 = vdwg.mxu0
    %v203 = vmul.f32 %v26, %v130
    %v205 = vsel %vm59, %v200, 0
    %207 = vmatprep.subr.mxu0 0.0
    %208 = vmatpush1.msra.mxu0 %v26
    %209 = vmatprep.subr.mxu0 0.0
    %210 = vmatpush1.msra.mxu0 0.0
    %211 = vmatprep.subr.mxu0 0.0
    %212 = vmatpush1.msra.mxu0 0.0
    %213 = vmatprep.subr.mxu0 0.0
    %214 = vmatpush1.msra.mxu0 0.0
    %215 = vmatprep.subr.mxu0 0.0
    %216 = vmatpush1.msra.mxu0 0.0
    %217 = vmatprep.subr.mxu0 0.0
    %218 = vmatpush1.msra.mxu0 0.0
    %219 = vmatprep.subr.mxu0 0.0
    %220 = vmatpush1.msra.mxu0 0.0
    %221 = vmatprep.subr.mxu0 0.0
    %222 = vmatpush1.msra.mxu0 0.0
    %223 = vmatprep.subr.mxu0 0.0
    %224 = vmatpush1.msra.mxu0 0.0
    %225 = vmatprep.subr.mxu0 0.0
    %226 = vmatpush1.msra.mxu0 0.0
    %227 = vmatprep.subr.mxu0 0.0
    %228 = vmatpush1.msra.mxu0 0.0
    %229 = vmatprep.subr.mxu0 0.0
    %230 = vmatpush1.msra.mxu0 0.0
    %231 = vmatprep.subr.mxu0 0.0
    %232 = vmatpush1.msra.mxu0 0.0
    %233 = vmatprep.subr.mxu0 0.0
    %234 = vmatpush1.msra.mxu0 0.0
    %235 = vmatprep.subr.mxu0 0.0
    %236 = vmatpush1.msra.mxu0 0.0
    %237 = vmatprep.subr.mxu0 0.0
    %238 = vmatpush1.msra.mxu0 0.0
    %239 = vmatprep.subr.mxu0 0.0
    %240 = vmatpush1.msra.mxu0 0.0
    %241 = vmatprep.subr.mxu0 0.0
    %242 = vmatpush1.msra.mxu0 0.0
    %243 = vmatprep.subr.mxu0 0.0
    %244 = vmatpush1.msra.mxu0 0.0
    %245 = vmatprep.subr.mxu0 0.0
    %246 = vmatpush1.msra.mxu0 0.0
    %247 = vmatprep.subr.mxu0 0.0
    %248 = vmatpush1.msra.mxu0 0.0
    %249 = vmatprep.subr.mxu0 0.0
    %250 = vmatpush1.msra.mxu0 0.0
    %251 = vmatprep.subr.mxu0 0.0
    %252 = vmatpush1.msra.mxu0 0.0
    %253 = vmatprep.subr.mxu0 0.0
    %254 = vmatpush1.msra.mxu0 0.0
    %255 = vmatprep.subr.mxu0 0.0
    %256 = vmatpush1.msra.mxu0 0.0
    %257 = vmatprep.subr.mxu0 0.0
    %258 = vmatpush1.msra.mxu0 0.0
    %259 = vmatprep.subr.mxu0 0.0
    %260 = vmatpush1.msra.mxu0 0.0
    %261 = vmatprep.subr.mxu0 0.0
    %262 = vmatpush1.msra.mxu0 0.0
    %263 = vmatprep.subr.mxu0 0.0
    %264 = vmatpush1.msra.mxu0 0.0
    %265 = vmatprep.subr.mxu0 0.0
    %266 = vmatpush1.msra.mxu0 0.0
    %267 = vmatprep.subr.mxu0 0.0
    %268 = vmatpush1.msra.mxu0 0.0
    %269 = vmatprep.subr.mxu0 0.0
    %270 = vmatpush1.msra.mxu0 0.0
    %271 = vmatprep.mubr.f32.mxu0 0.0
    %272 = vmatmul.mubr.f32.gmra.mrb[0].mxu0 %v205
    %v273 = vpop.f32.mrb[0].mxu0
    %v274 = vadd.f32 1e-09, %v273
    %v275 = vpop.f32.mrb[0].mxu0
    %276 = vdwg.mxu0
    %v277 = vrcp.pop %v274
    %v278 = vmul.f32 %v203, %v277
    %279 = vmatprep.subr.mxu0 0.0
    %280 = vmatpush1.xpose.msra.mxu0 %v278
    %281 = vmatprep.subr.mxu0 0.0
    %282 = vmatpush1.xpose.msra.mxu0 0.0
    %283 = vmatprep.subr.mxu0 0.0
    %284 = vmatpush1.xpose.msra.mxu0 0.0
    %285 = vmatprep.subr.mxu0 0.0
    %286 = vmatpush1.xpose.msra.mxu0 0.0
    %287 = vmatprep.subr.mxu0 0.0
    %288 = vmatpush1.xpose.msra.mxu0 0.0
    %289 = vmatprep.subr.mxu0 0.0
    %290 = vmatpush1.xpose.msra.mxu0 0.0
    %291 = vmatprep.subr.mxu0 0.0
    %292 = vmatpush1.xpose.msra.mxu0 0.0
    %293 = vmatprep.subr.mxu0 0.0
    %294 = vmatpush1.xpose.msra.mxu0 0.0
    %295 = vmatprep.subr.mxu0 0.0
    %296 = vmatpush1.xpose.msra.mxu0 0.0
    %297 = vmatprep.subr.mxu0 0.0
    %298 = vmatpush1.xpose.msra.mxu0 0.0
    %299 = vmatprep.subr.mxu0 0.0
    %300 = vmatpush1.xpose.msra.mxu0 0.0
    %301 = vmatprep.subr.mxu0 0.0
    %302 = vmatpush1.xpose.msra.mxu0 0.0
    %303 = vmatprep.subr.mxu0 0.0
    %304 = vmatpush1.xpose.msra.mxu0 0.0
    %305 = vmatprep.subr.mxu0 0.0
    %306 = vmatpush1.xpose.msra.mxu0 0.0
    %307 = vmatprep.subr.mxu0 0.0
    %308 = vmatpush1.xpose.msra.mxu0 0.0
    %309 = vmatprep.subr.mxu0 0.0
    %310 = vmatpush1.xpose.msra.mxu0 0.0
    %311 = vmatprep.subr.mxu0 0.0
    %312 = vmatpush1.xpose.msra.mxu0 0.0
    %313 = vmatprep.subr.mxu0 0.0
    %314 = vmatpush1.xpose.msra.mxu0 0.0
    %315 = vmatprep.subr.mxu0 0.0
    %316 = vmatpush1.xpose.msra.mxu0 0.0
    %317 = vmatprep.subr.mxu0 0.0
    %318 = vmatpush1.xpose.msra.mxu0 0.0
    %319 = vmatprep.subr.mxu0 0.0
    %320 = vmatpush1.xpose.msra.mxu0 0.0
    %321 = vmatprep.subr.mxu0 0.0
    %322 = vmatpush1.xpose.msra.mxu0 0.0
    %323 = vmatprep.subr.mxu0 0.0
    %324 = vmatpush1.xpose.msra.mxu0 0.0
    %325 = vmatprep.subr.mxu0 0.0
    %326 = vmatpush1.xpose.msra.mxu0 0.0
    %327 = vmatprep.subr.mxu0 0.0
    %328 = vmatpush1.xpose.msra.mxu0 0.0
    %329 = vmatprep.subr.mxu0 0.0
    %330 = vmatpush1.xpose.msra.mxu0 0.0
    %331 = vmatprep.subr.mxu0 0.0
    %332 = vmatpush1.xpose.msra.mxu0 0.0
    %333 = vmatprep.subr.mxu0 0.0
    %334 = vmatpush1.xpose.msra.mxu0 0.0
    %335 = vmatprep.subr.mxu0 0.0
    %336 = vmatpush1.xpose.msra.mxu0 0.0
    %337 = vmatprep.subr.mxu0 0.0
    %338 = vmatpush1.xpose.msra.mxu0 0.0
    %339 = vmatprep.subr.mxu0 0.0
    %340 = vmatpush1.xpose.msra.mxu0 0.0
    %341 = vmatprep.subr.mxu0 0.0
    %342 = vmatpush1.xpose.msra.mxu0 0.0
    %343 = vmatprep.mubr.f32.mxu0 0.0
    %344 = vmatmul.mubr.f32.gmra.mrb[0].mxu0 %v16
    %v345 = vpop.f32.mrb[0].mxu0
    %v346 = vadd.f32 0.0, %v345
    %v347 = vpop.f32.mrb[0].mxu0
    %348 = vdwg.mxu0
    %349 = vmatprep.subr.mxu0 0.0
    %350 = vmatpush1.xpose.msra.mxu0 %v278
    %351 = vmatprep.subr.mxu0 0.0
    %352 = vmatpush1.xpose.msra.mxu0 0.0
    %353 = vmatprep.subr.mxu0 0.0
    %354 = vmatpush1.xpose.msra.mxu0 0.0
    %355 = vmatprep.subr.mxu0 0.0
    %356 = vmatpush1.xpose.msra.mxu0 0.0
    %357 = vmatprep.subr.mxu0 0.0
    %358 = vmatpush1.xpose.msra.mxu0 0.0
    %359 = vmatprep.subr.mxu0 0.0
    %360 = vmatpush1.xpose.msra.mxu0 0.0
    %361 = vmatprep.subr.mxu0 0.0
    %362 = vmatpush1.xpose.msra.mxu0 0.0
    %363 = vmatprep.subr.mxu0 0.0
    %364 = vmatpush1.xpose.msra.mxu0 0.0
    %365 = vmatprep.subr.mxu0 0.0
    %366 = vmatpush1.xpose.msra.mxu0 0.0
    %367 = vmatprep.subr.mxu0 0.0
    %368 = vmatpush1.xpose.msra.mxu0 0.0
    %369 = vmatprep.subr.mxu0 0.0
    %370 = vmatpush1.xpose.msra.mxu0 0.0
    %371 = vmatprep.subr.mxu0 0.0
    %372 = vmatpush1.xpose.msra.mxu0 0.0
    %373 = vmatprep.subr.mxu0 0.0
    %374 = vmatpush1.xpose.msra.mxu0 0.0
    %375 = vmatprep.subr.mxu0 0.0
    %376 = vmatpush1.xpose.msra.mxu0 0.0
    %377 = vmatprep.subr.mxu0 0.0
    %378 = vmatpush1.xpose.msra.mxu0 0.0
    %379 = vmatprep.subr.mxu0 0.0
    %380 = vmatpush1.xpose.msra.mxu0 0.0
    %381 = vmatprep.subr.mxu0 0.0
    %382 = vmatpush1.xpose.msra.mxu0 0.0
    %383 = vmatprep.subr.mxu0 0.0
    %384 = vmatpush1.xpose.msra.mxu0 0.0
    %385 = vmatprep.subr.mxu0 0.0
    %386 = vmatpush1.xpose.msra.mxu0 0.0
    %387 = vmatprep.subr.mxu0 0.0
    %388 = vmatpush1.xpose.msra.mxu0 0.0
    %389 = vmatprep.subr.mxu0 0.0
    %390 = vmatpush1.xpose.msra.mxu0 0.0
    %391 = vmatprep.subr.mxu0 0.0
    %392 = vmatpush1.xpose.msra.mxu0 0.0
    %393 = vmatprep.subr.mxu0 0.0
    %394 = vmatpush1.xpose.msra.mxu0 0.0
    %395 = vmatprep.subr.mxu0 0.0
    %396 = vmatpush1.xpose.msra.mxu0 0.0
    %397 = vmatprep.subr.mxu0 0.0
    %398 = vmatpush1.xpose.msra.mxu0 0.0
    %399 = vmatprep.subr.mxu0 0.0
    %400 = vmatpush1.xpose.msra.mxu0 0.0
    %401 = vmatprep.subr.mxu0 0.0
    %402 = vmatpush1.xpose.msra.mxu0 0.0
    %403 = vmatprep.subr.mxu0 0.0
    %404 = vmatpush1.xpose.msra.mxu0 0.0
    %405 = vmatprep.subr.mxu0 0.0
    %406 = vmatpush1.xpose.msra.mxu0 0.0
    %407 = vmatprep.subr.mxu0 0.0
    %408 = vmatpush1.xpose.msra.mxu0 0.0
    %409 = vmatprep.subr.mxu0 0.0
    %410 = vmatpush1.xpose.msra.mxu0 0.0
    %411 = vmatprep.subr.mxu0 0.0
    %412 = vmatpush1.xpose.msra.mxu0 0.0
    %413 = vmatprep.mubr.f32.mxu0 0.0
    %414 = vmatmul.mubr.f32.gmra.mrb[0].mxu0 %v278
    %v415 = vpop.f32.mrb[0].mxu0
    %v416 = vadd.f32 0.0, %v415
    %v417 = vpop.f32.mrb[0].mxu0
    %418 = vdwg.mxu0
    %v419 = vmul.f32 %v25, %v346
    %v421 = vsel %vm59, %v25, 0
    %423 = vmatprep.subr.mxu0 0.0
    %424 = vmatpush1.msra.mxu0 %v416
    %425 = vmatprep.subr.mxu0 0.0
    %426 = vmatpush1.msra.mxu0 0.0
    %427 = vmatprep.subr.mxu0 0.0
    %428 = vmatpush1.msra.mxu0 0.0
    %429 = vmatprep.subr.mxu0 0.0
    %430 = vmatpush1.msra.mxu0 0.0
    %431 = vmatprep.subr.mxu0 0.0
    %432 = vmatpush1.msra.mxu0 0.0
    %433 = vmatprep.subr.mxu0 0.0
    %434 = vmatpush1.msra.mxu0 0.0
    %435 = vmatprep.subr.mxu0 0.0
    %436 = vmatpush1.msra.mxu0 0.0
    %437 = vmatprep.subr.mxu0 0.0
    %438 = vmatpush1.msra.mxu0 0.0
    %439 = vmatprep.subr.mxu0 0.0
    %440 = vmatpush1.msra.mxu0 0.0
    %441 = vmatprep.subr.mxu0 0.0
    %442 = vmatpush1.msra.mxu0 0.0
    %443 = vmatprep.subr.mxu0 0.0
    %444 = vmatpush1.msra.mxu0 0.0
    %445 = vmatprep.subr.mxu0 0.0
    %446 = vmatpush1.msra.mxu0 0.0
    %447 = vmatprep.subr.mxu0 0.0
    %448 = vmatpush1.msra.mxu0 0.0
    %449 = vmatprep.subr.mxu0 0.0
    %450 = vmatpush1.msra.mxu0 0.0
    %451 = vmatprep.subr.mxu0 0.0
    %452 = vmatpush1.msra.mxu0 0.0
    %453 = vmatprep.subr.mxu0 0.0
    %454 = vmatpush1.msra.mxu0 0.0
    %455 = vmatprep.subr.mxu0 0.0
    %456 = vmatpush1.msra.mxu0 0.0
    %457 = vmatprep.subr.mxu0 0.0
    %458 = vmatpush1.msra.mxu0 0.0
    %459 = vmatprep.subr.mxu0 0.0
    %460 = vmatpush1.msra.mxu0 0.0
    %461 = vmatprep.subr.mxu0 0.0
    %462 = vmatpush1.msra.mxu0 0.0
    %463 = vmatprep.subr.mxu0 0.0
    %464 = vmatpush1.msra.mxu0 0.0
    %465 = vmatprep.subr.mxu0 0.0
    %466 = vmatpush1.msra.mxu0 0.0
    %467 = vmatprep.subr.mxu0 0.0
    %468 = vmatpush1.msra.mxu0 0.0
    %469 = vmatprep.subr.mxu0 0.0
    %470 = vmatpush1.msra.mxu0 0.0
    %471 = vmatprep.subr.mxu0 0.0
    %472 = vmatpush1.msra.mxu0 0.0
    %473 = vmatprep.subr.mxu0 0.0
    %474 = vmatpush1.msra.mxu0 0.0
    %475 = vmatprep.subr.mxu0 0.0
    %476 = vmatpush1.msra.mxu0 0.0
    %477 = vmatprep.subr.mxu0 0.0
    %478 = vmatpush1.msra.mxu0 0.0
    %479 = vmatprep.subr.mxu0 0.0
    %480 = vmatpush1.msra.mxu0 0.0
    %481 = vmatprep.subr.mxu0 0.0
    %482 = vmatpush1.msra.mxu0 0.0
    %483 = vmatprep.subr.mxu0 0.0
    %484 = vmatpush1.msra.mxu0 0.0
    %485 = vmatprep.subr.mxu0 0.0
    %486 = vmatpush1.msra.mxu0 0.0
    %487 = vmatprep.mubr.f32.mxu0 0.0
    %488 = vmatmul.mubr.f32.gmra.mrb[0].mxu0 %v421
    %v489 = vpop.f32.mrb[0].mxu0
    %v490 = vadd.f32 1e-09, %v489
    %v491 = vpop.f32.mrb[0].mxu0
    %492 = vdwg.mxu0
    %v493 = vrcp.pop %v490
    %v494 = vmul.f32 %v419, %v493
  $region18: #{_mcorr_core.5} parent=0 // loop_footer
    %s24 = sadd.s32 1, %s20
  $region19: #{_mcorr_core.5} parent=0 // loop_footer_branch
    %19 = sbr.rel target = $region15
  $region20: #{_mcorr_core.5} parent=0 // loop_exit
    _
  %vm495 = vcmask 64512
  %496 = vst.msk [vmem:[%s3] sm:$0xff] %vm495, %v25
  %497 = vst [vmem:[%s4] sm:$0xff] %v26
  // Predicated region
  $region21: #{_mcorr_core.5} parent=0 // pred_check
    _
  $region22: #{_mcorr_core.5} parent=0 // pred_check_branch
    %499 = sbr.rel (0) target = $region24
  $region23: #{_mcorr_core.5} parent=0 // pred_region
    _
  $region24: #{_mcorr_core.5} parent=0 // pred_fallthru
    _
  // Predicated region
  $region25: #{_mcorr_core.5} parent=0 // pred_check
    _
  $region26: #{_mcorr_core.5} parent=0 // pred_check_branch
    %501 = sbr.rel (0) target = $region28
  $region27: #{_mcorr_core.5} parent=0 // pred_region
    _
  $region28: #{_mcorr_core.5} parent=0 // pred_fallthru
    _
  // Predicated region
  $region29: #{_mcorr_core.5} parent=0 // pred_check
    _
  $region30: #{_mcorr_core.5} parent=0 // pred_check_branch
    %503 = sbr.rel (0) target = $region32
  $region31: #{_mcorr_core.5} parent=0 // pred_region
    _
  $region32: #{_mcorr_core.5} parent=0 // pred_fallthru
    _
  // Predicated region
  $region33: #{_mcorr_core.5} parent=0 // pred_check
    _
  $region34: #{_mcorr_core.5} parent=0 // pred_check_branch
    %505 = sbr.rel (0) target = $region36
  $region35: #{_mcorr_core.5} parent=0 // pred_region
    _
  $region36: #{_mcorr_core.5} parent=0 // pred_fallthru
    _

</llo_original>
